<compile_context>
chip_gen: v7x
topology: tpu7x:2x2x1
jax: 0.10.0
libtpu: 0.0.40
codegen_flags: <defaults>
</compile_context>

<pallas_src>
import functools
import math

import jax
import jax.numpy as jnp
from jax.experimental import pallas as pl
from jax.experimental.pallas import tpu as pltpu

block_size = 8          # T
embedding_dims = 32     # E
vocab_size = 65         # V (e.g. tiny-shakespeare charset size)

LANE = 128


def _round_up(x, m):
    return (x + m - 1) // m * m


def _bigram_kernel(idx_ref, tgt_ref, fused_ref, posb_ref, *out_refs,
                   n_valid, store_logits):
    if store_logits:
        logits_ref, loss_ref = out_refs
    else:
        (loss_ref,) = out_refs

    TM = idx_ref.shape[0]           # rows in this tile (multiple of 8 and T)
    T, Vp = posb_ref.shape          # (block_size, padded vocab = 128)

    ids = idx_ref[...]              # (TM, 1) int32
    tgt = tgt_ref[...]              # (TM, 1) int32
    col = jax.lax.broadcasted_iota(jnp.int32, (TM, Vp), 1)

    # One-hot built in-register; single fused 128-deep MXU pass against the
    # precomputed (tok_tbl @ W) table (bf16 operands, f32 accumulation).
    onehot = (col == ids).astype(jnp.bfloat16)                      # (TM, Vp)
    logits = jnp.dot(onehot, fused_ref[...],
                     preferred_element_type=jnp.float32)            # (TM, Vp) f32

    # pos @ W + b (f32; padded vocab cols carry -1e9) expanded row r -> r % T.
    # TM % T == 0 and (T, Vp) = (8, 128) is exactly one tile, so this
    # broadcast+reshape is layout-free.
    reps = TM // T
    pos_b = jnp.broadcast_to(posb_ref[...][None], (reps, T, Vp)).reshape(TM, Vp)
    logits = logits + pos_b

    if store_logits:
        logits_ref[...] = logits.astype(logits_ref.dtype)           # bf16 store

    # Cross-entropy partial sum for this row tile (padded vocab cols are -1e9
    # via pos_b so exp() kills them; padded rows masked below).
    m = jnp.max(logits, axis=-1, keepdims=True)                     # (TM, 1)
    lse = m + jnp.log(jnp.sum(jnp.exp(logits - m), axis=-1, keepdims=True))
    tgt_logit = jnp.sum(jnp.where(col == tgt, logits, 0.0),
                        axis=-1, keepdims=True)                     # (TM, 1)
    nll = lse - tgt_logit

    row = pl.program_id(0) * TM + jax.lax.broadcasted_iota(
        jnp.int32, (TM, 1), 0)
    nll = jnp.where(row < n_valid, nll, 0.0)
    loss_ref[0, 0] = jnp.sum(nll)


def _choose_row_tile(N, row_tile, T):
    # Rows per grid step: multiple of 8 (sublanes) and of T (in-kernel pos tile).
    align = (8 * T) // math.gcd(8, T)
    tm = _round_up(max(min(row_tile, _round_up(N, align)), align), align)
    # v7x megacore: once the problem is big enough, keep >= 2 parallel grid
    # blocks so both TensorCores get work (no effect on v5e/v6e).
    if N >= 512:
        tm = min(tm, _round_up(pl.cdiv(N, 2), align))
    return tm


def bigram_forward(idx, targets, params, *, row_tile=1024,
                   logits_dtype=jnp.bfloat16, want_logits=True):
    """Mirrors BigramLanguageModel.forward(idx, targets).

    Returns (logits, loss).  `logits` is the row/vocab padded (Np, Vp) block
    (Np = round_up(B*T, tile), Vp = 128, dtype `logits_dtype`); the consumer
    takes [:B*T, :V] if it needs the exact torch view, so the wrapper never
    forces an extra HBM round-trip.  want_logits=False skips the logits
    output entirely (loss-only mode) and returns (None, loss).
    """
    tok_tbl, pos_tbl, w, b = params
    B, T = idx.shape
    V, E = tok_tbl.shape
    N = B * T
    Vp = _round_up(V, LANE)

    TM = _choose_row_tile(N, row_tile, T)
    Np = _round_up(N, TM)
    n_blocks = Np // TM

    def pad_rows(a):
        return jnp.pad(a, ((0, Np - a.shape[0]), (0, 0)))

    # Tiny int32 id columns instead of one-hots / gathered embeddings.
    idx_col = pad_rows(idx.reshape(N, 1).astype(jnp.int32))
    tgt_col = pad_rows(targets.reshape(N, 1).astype(jnp.int32))

    # Fuse the two matmuls: logits = onehot @ (tok_tbl @ W) + (pos @ W + b).
    # Both products are computed in f32; only the fused token table is cast
    # to bf16 (once), so bf16 rounding is not compounded.
    w32 = w.astype(jnp.float32)
    fused = jnp.pad(tok_tbl.astype(jnp.float32) @ w32,
                    ((0, Vp - V), (0, Vp - V))).astype(jnp.bfloat16)   # (Vp, Vp)
    posb = pos_tbl[:T].astype(jnp.float32) @ w32 + b.astype(jnp.float32)
    posb = jnp.pad(posb, ((0, 0), (0, Vp - V)),
                   constant_values=-1e9)                               # (T, Vp)

    kernel = functools.partial(_bigram_kernel, n_valid=N,
                               store_logits=want_logits)

    out_shapes, out_specs = [], []
    if want_logits:
        out_shapes.append(jax.ShapeDtypeStruct((Np, Vp), logits_dtype))
        out_specs.append(pl.BlockSpec((TM, Vp), lambda i: (i, 0)))
    out_shapes.append(jax.ShapeDtypeStruct((n_blocks, 1), jnp.float32))
    out_specs.append(pl.BlockSpec((1, 1), lambda i: (i, 0),
                                  memory_space=pltpu.SMEM))

    results = pl.pallas_call(
        kernel,
        out_shape=tuple(out_shapes),
        grid_spec=pltpu.PrefetchScalarGridSpec(
            num_scalar_prefetch=0,
            grid=(n_blocks,),
            in_specs=[
                pl.BlockSpec((TM, 1), lambda i: (i, 0)),    # token ids
                pl.BlockSpec((TM, 1), lambda i: (i, 0)),    # target ids
                pl.BlockSpec((Vp, Vp), lambda i: (0, 0)),   # fused tok@W (bf16)
                pl.BlockSpec((T, Vp), lambda i: (0, 0)),    # pos@W + b   (f32)
            ],
            out_specs=out_specs,
        ),
        # Per-step VMEM: 32 KiB fused table + a (TM, 128) logits block; at the
        # default row_tile=1024 this is far under every generation's scoped
        # VMEM limit (incl. v5e's 16 MiB), so no vmem_limit_bytes override.
        compiler_params=pltpu.CompilerParams(
            dimension_semantics=("parallel",)),
    )(idx_col, tgt_col, fused, posb)

    if want_logits:
        logits_p, nll_partials = results
    else:
        logits_p = None
        (nll_partials,) = results

    loss = jnp.sum(nll_partials) / N
    return logits_p, loss


def init_params(key):
    k1, k2, k3, k4 = jax.random.split(key, 4)
    tok_tbl = jax.random.normal(k1, (vocab_size, embedding_dims), jnp.float32)
    pos_tbl = jax.random.normal(k2, (block_size, embedding_dims), jnp.float32)
    # nn.Linear(E, V): PyTorch weight is (V, E); store transposed as (E, V).
    bound = 1.0 / (embedding_dims ** 0.5)
    w = jax.random.uniform(k3, (embedding_dims, vocab_size), jnp.float32,
                           -bound, bound)
    b = jax.random.uniform(k4, (vocab_size,), jnp.float32, -bound, bound)
    return tok_tbl, pos_tbl, w, b


def _reference(idx, targets, params):
    tok_tbl, pos_tbl, w, b = params
    B, T = idx.shape
    x = tok_tbl[idx] + pos_tbl[:T][None, :, :]
    logits = x @ w + b
    logits2d = logits.reshape(B * T, vocab_size)
    logp = jax.nn.log_softmax(logits2d, axis=-1)
    loss = -jnp.mean(logp[jnp.arange(B * T), targets.reshape(-1)])
    return logits2d, loss


if __name__ == "__main__":
    key = jax.random.PRNGKey(0)
    pkey, ikey, tkey = jax.random.split(key, 3)
    params = init_params(pkey)

    B, T = 2, block_size
    idx = jax.random.randint(ikey, (B, T), 0, vocab_size, dtype=jnp.int32)
    targets = jax.random.randint(tkey, (B, T), 0, vocab_size, dtype=jnp.int32)

    logits_pad, loss = bigram_forward(idx, targets, params)
    _, loss_only = bigram_forward(idx, targets, params, want_logits=False)
    jax.block_until_ready((logits_pad, loss, loss_only))

    ref_logits, ref_loss = _reference(idx, targets, params)
    N = B * T
    # Consumer-side view of the padded kernel output (padding kept on the
    # kernel side so the wrapper never forces an extra HBM round-trip).
    logits = logits_pad[:N, :vocab_size].astype(jnp.float32)

    # bf16 fused table + bf16 logits store => tolerance loosened vs f32 ref.
    assert jnp.allclose(logits, ref_logits, atol=6e-2, rtol=2e-2)
    assert jnp.allclose(loss, ref_loss, atol=5e-2, rtol=2e-2)
    assert jnp.allclose(loss_only, ref_loss, atol=5e-2, rtol=2e-2)

    print("KERNEL_OK")
</pallas_src>

<mosaic_0001>
module attributes {stable_mosaic.version = 11 : i64} {
  func.func @_bigram_kernel(%arg0: i32, %arg1: memref<16x1xi32, #tpu.memory_space<vmem>>, %arg2: memref<16x1xi32, #tpu.memory_space<vmem>>, %arg3: memref<128x128xbf16, #tpu.memory_space<vmem>>, %arg4: memref<8x128xf32, #tpu.memory_space<vmem>>, %arg5: memref<16x128xbf16, #tpu.memory_space<vmem>>, %arg6: memref<1x1xf32, #tpu.memory_space<smem>>) attributes {dimension_semantics = [#tpu.dimension_semantics<parallel>], iteration_bounds = array<i64: 1>, scalar_prefetch = 0 : i64, scratch_operands = 0 : i64, tpu.core_type = #tpu.core_type<tc>, window_params = [{transform_indices = @transform_0, window_bounds = array<i64: 16, 1>}, {transform_indices = @transform_1, window_bounds = array<i64: 16, 1>}, {pipeline_mode = #tpu.pipeline_mode<synchronous>, transform_indices = @transform_2, window_bounds = array<i64: 128, 128>}, {pipeline_mode = #tpu.pipeline_mode<synchronous>, transform_indices = @transform_3, window_bounds = array<i64: 8, 128>}, {transform_indices = @transform_4, window_bounds = array<i64: 16, 128>}, {transform_indices = @transform_5, window_bounds = array<i64: 1, 1>}]} {
    %c0 = arith.constant 0 : index
    %c0_0 = arith.constant 0 : index
    %0 = vector.load %arg1[%c0, %c0_0] : memref<16x1xi32, #tpu.memory_space<vmem>>, vector<16x1xi32>
    %c0_1 = arith.constant 0 : index
    %c0_2 = arith.constant 0 : index
    %1 = vector.load %arg2[%c0_1, %c0_2] : memref<16x1xi32, #tpu.memory_space<vmem>>, vector<16x1xi32>
    %2 = tpu.iota {dimensions = array<i32: 1>} : vector<16x128xi32>
    %3 = vector.broadcast %0 : vector<16x1xi32> to vector<16x128xi32>
    %4 = arith.cmpi eq, %2, %3 : vector<16x128xi32>
    %5 = arith.extui %4 : vector<16x128xi1> to vector<16x128xi32>
    %6 = arith.sitofp %5 : vector<16x128xi32> to vector<16x128xf32>
    %7 = arith.truncf %6 : vector<16x128xf32> to vector<16x128xbf16>
    %c0_3 = arith.constant 0 : index
    %c0_4 = arith.constant 0 : index
    %8 = vector.load %arg3[%c0_3, %c0_4] : memref<128x128xbf16, #tpu.memory_space<vmem>>, vector<128x128xbf16>
    %cst = arith.constant dense<0.000000e+00> : vector<16x128xf32>
    %9 = tpu.matmul %7, %8, %cst {dimension_numbers = #tpu.dot_dimension_numbers<[1], [0], [0], [1], [0, 0, 1, 1], [], []>} : vector<16x128xbf16>, vector<128x128xbf16>, vector<16x128xf32> -> vector<16x128xf32>
    %c0_5 = arith.constant 0 : index
    %c0_6 = arith.constant 0 : index
    %10 = vector.load %arg4[%c0_5, %c0_6] : memref<8x128xf32, #tpu.memory_space<vmem>>, vector<8x128xf32>
    %11 = vector.shape_cast %10 : vector<8x128xf32> to vector<1x8x128xf32>
    %12 = vector.shape_cast %11 : vector<1x8x128xf32> to vector<1x8x128xf32>
    %13 = vector.broadcast %12 : vector<1x8x128xf32> to vector<2x8x128xf32>
    %14 = vector.shape_cast %13 : vector<2x8x128xf32> to vector<16x128xf32>
    %15 = arith.addf %9, %14 : vector<16x128xf32>
    %16 = arith.truncf %15 : vector<16x128xf32> to vector<16x128xbf16>
    %c0_7 = arith.constant 0 : index
    %c0_8 = arith.constant 0 : index
    %17 = vector.load %arg5[%c0_7, %c0_8] : memref<16x128xbf16, #tpu.memory_space<vmem>>, vector<16x128xbf16>
    tpu.vector_store %arg5[%c0_7, %c0_8], %16 {strides = array<i32>} : memref<16x128xbf16, #tpu.memory_space<vmem>>, vector<16x128xbf16>,
    %cst_9 = arith.constant dense<0xFF800000> : vector<16xf32>
    %18 = vector.multi_reduction <maximumf>, %15, %cst_9 [1] : vector<16x128xf32> to vector<16xf32>
    %19 = vector.shape_cast %18 : vector<16xf32> to vector<16x1xf32>
    %20 = vector.broadcast %19 : vector<16x1xf32> to vector<16x128xf32>
    %21 = arith.subf %15, %20 : vector<16x128xf32>
    %22 = math.exp %21 : vector<16x128xf32>
    %cst_10 = arith.constant dense<0.000000e+00> : vector<16xf32>
    %23 = vector.multi_reduction <add>, %22, %cst_10 [1] : vector<16x128xf32> to vector<16xf32>
    %24 = vector.shape_cast %23 : vector<16xf32> to vector<16x1xf32>
    %25 = math.log %24 : vector<16x1xf32>
    %26 = arith.addf %19, %25 : vector<16x1xf32>
    %27 = vector.broadcast %1 : vector<16x1xi32> to vector<16x128xi32>
    %28 = arith.cmpi eq, %2, %27 : vector<16x128xi32>
    %cst_11 = arith.constant 0.000000e+00 : f32
    %29 = vector.broadcast %cst_11 : f32 to vector<16x128xf32>
    %30 = arith.select %28, %15, %29 : vector<16x128xi1>, vector<16x128xf32>
    %cst_12 = arith.constant dense<0.000000e+00> : vector<16xf32>
    %31 = vector.multi_reduction <add>, %30, %cst_12 [1] : vector<16x128xf32> to vector<16xf32>
    %32 = vector.shape_cast %31 : vector<16xf32> to vector<16x1xf32>
    %33 = arith.subf %26, %32 : vector<16x1xf32>
    %c16_i32 = arith.constant 16 : i32
    %34 = arith.muli %arg0, %c16_i32 : i32
    %35 = tpu.iota {dimensions = array<i32: 0>} : vector<16x1xi32>
    %36 = vector.broadcast %34 : i32 to vector<16x1xi32>
    %37 = arith.addi %36, %35 : vector<16x1xi32>
    %c16_i32_13 = arith.constant 16 : i32
    %38 = vector.broadcast %c16_i32_13 : i32 to vector<16x1xi32>
    %39 = arith.cmpi slt, %37, %38 : vector<16x1xi32>
    %cst_14 = arith.constant 0.000000e+00 : f32
    %40 = vector.broadcast %cst_14 : f32 to vector<16x1xf32>
    %41 = arith.select %39, %33, %40 : vector<16x1xi1>, vector<16x1xf32>
    %42 = vector.shape_cast %41 : vector<16x1xf32> to vector<1x16x1xf32>
    %cst_15 = arith.constant dense<0.000000e+00> : vector<1xf32>
    %43 = vector.multi_reduction <add>, %42, %cst_15 [1, 2] : vector<1x16x1xf32> to vector<1xf32>
    %44 = vector.shape_cast %43 : vector<1xf32> to vector<1x1x1xf32>
    %45 = vector.extract %44[0, 0, 0] : f32 from vector<1x1x1xf32>
    %c0_16 = arith.constant 0 : index
    %c0_17 = arith.constant 0 : index
    %46 = memref.load %arg6[%c0_16, %c0_17] : memref<1x1xf32, #tpu.memory_space<smem>>
    memref.store %45, %arg6[%c0_16, %c0_17] : memref<1x1xf32, #tpu.memory_space<smem>>
    return
  }
  func.func @transform_0(%arg0: i32) -> (i32, i32) {
    %c0_i32 = arith.constant 0 : i32
    %c0_i32_0 = arith.constant 0 : i32
    return %arg0, %c0_i32 : i32, i32
  }
  func.func @transform_1(%arg0: i32) -> (i32, i32) {
    %c0_i32 = arith.constant 0 : i32
    %c0_i32_0 = arith.constant 0 : i32
    return %arg0, %c0_i32 : i32, i32
  }
  func.func @transform_2(%arg0: i32) -> (i32, i32) {
    %c0_i32 = arith.constant 0 : i32
    %c0_i32_0 = arith.constant 0 : i32
    %c0_i32_1 = arith.constant 0 : i32
    return %c0_i32, %c0_i32_0 : i32, i32
  }
  func.func @transform_3(%arg0: i32) -> (i32, i32) {
    %c0_i32 = arith.constant 0 : i32
    %c0_i32_0 = arith.constant 0 : i32
    %c0_i32_1 = arith.constant 0 : i32
    return %c0_i32, %c0_i32_0 : i32, i32
  }
  func.func @transform_4(%arg0: i32) -> (i32, i32) {
    %c0_i32 = arith.constant 0 : i32
    %c0_i32_0 = arith.constant 0 : i32
    return %arg0, %c0_i32 : i32, i32
  }
  func.func @transform_5(%arg0: i32) -> (i32, i32) {
    %c0_i32 = arith.constant 0 : i32
    %c0_i32_0 = arith.constant 0 : i32
    return %arg0, %c0_i32 : i32, i32
  }
}

</mosaic_0001>

<llo_original>
// kernel: tpu_custom_call.1
$region0: #{tpu_custom_call.1}
  #allocation0 [shape = 'u32[]', space=smem, size = 0x4, offset = 0x4, fixed_abs, tag = 'smem constant byte address 0x4 - core index']
  #allocation1 [shape = 'u32[144,128]{1,0:T(1,128)}', space=vmem, size = 0x12000, scoped, tag = 'internal scratch']
  %s0 = inlined_call_operand.vmem [shape: s32[16,1], index: 0, kind: input, shape index: {}]
  %s1 = inlined_call_operand.vmem [shape: s32[16,1], index: 1, kind: input, shape index: {}]
  %s2 = inlined_call_operand.hbm [shape: bf16[128,128], index: 2, kind: input, shape index: {}]
  %s3 = inlined_call_operand.vmem [shape: f32[8,128], index: 3, kind: input, shape index: {}]
  %s4 = inlined_call_operand.hbm [shape: bf16[16,128], index: 4, kind: output, shape index: {0}]
  %s5 = inlined_call_operand.hbm [shape: f32[1,1], index: 5, kind: output, shape index: {1}]
  %6 = xla_tuple %s4, %s5
  %s7 = sld [smem:[#allocation0]]
  $region38: #{tpu_custom_call.1} parent=0
    _
  %s9 = ssub.s32 1, %s7
  %s10 = scalar_select 0, %s9, %s7
  $region1: #{tpu_custom_call.1} parent=0
    #allocation2 [shape = 'u8[32768]{0}', space=vmem, size = 0x8000, scoped, tag = 'input window, operand 2, single buffered']
    #allocation3 [shape = 's32[1]{0}', space=sflag, size = 0x4, scoped, tag = 'scoped memory for tpu_custom_call.1']
    #allocation4 [shape = 's32[1]{0}', space=sflag, size = 0x4, scoped, tag = 'scoped memory for tpu_custom_call.1']
    #allocation5 [shape = 's32[1]{0}', space=sflag, size = 0x4, scoped, tag = 'scoped memory for tpu_custom_call.1']
    #allocation6 [shape = 'u8[4096]{0}', space=vmem, size = 0x1000, scoped, tag = 'output window, operand 0, single buffered']
    #allocation7 [shape = 'u8[512]{0}', space=smem, size = 0x200, scoped, tag = 'output window, operand 1, single buffered']
    %11 = vsyncpa [#allocation3], 0
    %12 = vsyncpa [#allocation4], 0
    %13 = vsyncpa [#allocation5], 0
    // Predicated region
    $region2: #{tpu_custom_call.1} parent=1 // pred_check
      _
    $region3: #{tpu_custom_call.1} parent=1 // pred_check_branch
      %15 = sbr.rel (0) target = $region5
    $region4: #{tpu_custom_call.1} parent=1 // pred_region
      _
    $region5: #{tpu_custom_call.1} parent=1 // pred_fallthru
      _
    // Predicated region
    $region6: #{tpu_custom_call.1} parent=1 // pred_check
      _
    $region7: #{tpu_custom_call.1} parent=1 // pred_check_branch
      %17 = sbr.rel (0) target = $region9
    $region8: #{tpu_custom_call.1} parent=1 // pred_region
      _
    $region9: #{tpu_custom_call.1} parent=1 // pred_fallthru
      _
    // Predicated region
    $region10: #{tpu_custom_call.1} parent=1 // pred_check
      _
    $region11: #{tpu_custom_call.1} parent=1 // pred_check_branch
      %19 = sbr.rel (0) target = $region13
    $region12: #{tpu_custom_call.1} parent=1 // pred_region
      %s21 = ssub.s32 1024, 1024
      %22 = vsyncadd [#allocation3], %s21
      %s23 = sshll.u32 [#allocation2], 4
      %s24 = int_to_ptr.vmem [resolvable:$true] %s23
      %29 = dma.hbm_to_vmem [thread:$0]  %s2, 1024, %s24, [#allocation3], 64, 64, 4
    $region13: #{tpu_custom_call.1} parent=1 // pred_fallthru
      _
    // Predicated region
    $region14: #{tpu_custom_call.1} parent=1 // pred_check
      _
    $region15: #{tpu_custom_call.1} parent=1 // pred_check_branch
      %31 = sbr.rel (0) target = $region17
    $region16: #{tpu_custom_call.1} parent=1 // pred_region
      _
    $region17: #{tpu_custom_call.1} parent=1 // pred_fallthru
      _
    // Predicated region
    $region18: #{tpu_custom_call.1} parent=1 // pred_check
      _
    $region19: #{tpu_custom_call.1} parent=1 // pred_check_branch
      %33 = sbr.rel (0) target = $region21
    $region20: #{tpu_custom_call.1} parent=1 // pred_region
      %34 = dma.done [#allocation3], 1024
    $region21: #{tpu_custom_call.1} parent=1 // pred_fallthru
      _
    %v36 = vld [vmem:[%s0] sm:$0xff]
    %v37 = vld [vmem:[%s0 + $0x8] sm:$0xff]
    %v38 = vld [vmem:[%s1] sm:$0xff]
    %v39 = vld [vmem:[%s1 + $0x8] sm:$0xff]
    %v40 = vlaneseq
    %v41 = vand.u32 %v40, 127
    %42 = vset.pattern.permute.xlu0 0
    %43 = vperm.xlu0 %42, %v36
    %v44 = vpop.permute.xlu0 %43
    %45 = vset.pattern.permute.xlu0 0
    %46 = vperm.xlu0 %45, %v37
    %v47 = vpop.permute.xlu0 %46
    %vm48 = vcmp.eq.s32.totalorder %v41, %v44
    %vm49 = vcmp.eq.s32.totalorder %v41, %v47
    %v50 = vsel %vm48, 1, 0
    %v51 = vsel %vm49, 1, 0
    %v52 = vcvt.s32.f32 %v50
    %v53 = vcvt.s32.f32 %v51
    %v54 = vpack.c.bf16 %v53, %v52
    %v55 = vld [vmem:[#allocation2] sm:$0xf]
    %v56 = vld [vmem:[#allocation2 + $0x4] sm:$0xf]
    %v57 = vld [vmem:[#allocation2 + $0x8] sm:$0xf]
    %v58 = vld [vmem:[#allocation2 + $0xc] sm:$0xf]
    %v59 = vld [vmem:[#allocation2 + $0x10] sm:$0xf]
    %v60 = vld [vmem:[#allocation2 + $0x14] sm:$0xf]
    %v61 = vld [vmem:[#allocation2 + $0x18] sm:$0xf]
    %v62 = vld [vmem:[#allocation2 + $0x1c] sm:$0xf]
    %v63 = vld [vmem:[#allocation2 + $0x20] sm:$0xf]
    %v64 = vld [vmem:[#allocation2 + $0x24] sm:$0xf]
    %v65 = vld [vmem:[#allocation2 + $0x28] sm:$0xf]
    %v66 = vld [vmem:[#allocation2 + $0x2c] sm:$0xf]
    %v67 = vld [vmem:[#allocation2 + $0x30] sm:$0xf]
    %v68 = vld [vmem:[#allocation2 + $0x34] sm:$0xf]
    %v69 = vld [vmem:[#allocation2 + $0x38] sm:$0xf]
    %v70 = vld [vmem:[#allocation2 + $0x3c] sm:$0xf]
    %v71 = vld [vmem:[%s3] sm:$0xff]
    %v88 = vunpack.c.l.b16 %v55
    %v89 = vunpack.c.l.b16 %v56
    %v90 = vunpack.c.l.b16 %v57
    %v91 = vunpack.c.l.b16 %v58
    %v92 = vunpack.c.l.b16 %v59
    %v93 = vunpack.c.l.b16 %v60
    %v94 = vunpack.c.l.b16 %v61
    %v95 = vunpack.c.l.b16 %v62
    %v96 = vunpack.c.l.b16 %v63
    %v97 = vunpack.c.l.b16 %v64
    %v98 = vunpack.c.l.b16 %v65
    %v99 = vunpack.c.l.b16 %v66
    %v100 = vunpack.c.l.b16 %v67
    %v101 = vunpack.c.l.b16 %v68
    %v102 = vunpack.c.l.b16 %v69
    %v103 = vunpack.c.l.b16 %v70
    %v104 = vpack.c.b16 %v89, %v88
    %v105 = vpack.c.b16 %v91, %v90
    %v106 = vpack.c.b16 %v93, %v92
    %v107 = vpack.c.b16 %v95, %v94
    %v108 = vpack.c.b16 %v97, %v96
    %v109 = vpack.c.b16 %v99, %v98
    %v110 = vpack.c.b16 %v101, %v100
    %v111 = vpack.c.b16 %v103, %v102
    %120 = vmatprep.subr.bf16.mxu0 0
    %121 = vmatpush1.bf16.msra.mxu0 %v104
    %122 = vmatprep.subr.bf16.mxu0 0
    %123 = vmatpush1.bf16.msra.mxu0 %v105
    %124 = vmatprep.subr.bf16.mxu0 0
    %125 = vmatpush1.bf16.msra.mxu0 %v106
    %126 = vmatprep.subr.bf16.mxu0 0
    %127 = vmatpush1.bf16.msra.mxu0 %v107
    %128 = vmatprep.subr.bf16.mxu0 0
    %129 = vmatpush1.bf16.msra.mxu0 %v108
    %130 = vmatprep.subr.bf16.mxu0 0
    %131 = vmatpush1.bf16.msra.mxu0 %v109
    %132 = vmatprep.subr.bf16.mxu0 0
    %133 = vmatpush1.bf16.msra.mxu0 %v110
    %134 = vmatprep.subr.bf16.mxu0 0
    %135 = vmatpush1.bf16.msra.mxu0 %v111
    %136 = vmatprep.subr.bf16.mxu0 0
    %137 = vmatpush1.bf16.msra.mxu0 0
    %138 = vmatprep.subr.bf16.mxu0 0
    %139 = vmatpush1.bf16.msra.mxu0 0
    %140 = vmatprep.subr.bf16.mxu0 0
    %141 = vmatpush1.bf16.msra.mxu0 0
    %142 = vmatprep.subr.bf16.mxu0 0
    %143 = vmatpush1.bf16.msra.mxu0 0
    %144 = vmatprep.subr.bf16.mxu0 0
    %145 = vmatpush1.bf16.msra.mxu0 0
    %146 = vmatprep.subr.bf16.mxu0 0
    %147 = vmatpush1.bf16.msra.mxu0 0
    %148 = vmatprep.subr.bf16.mxu0 0
    %149 = vmatpush1.bf16.msra.mxu0 0
    %150 = vmatprep.subr.bf16.mxu0 0
    %151 = vmatpush1.bf16.msra.mxu0 0
    %152 = vmatprep.mubr.bf16.mxu0 0
    %153 = vmatmul.mubr.bf16.gmra.mrb[0].mxu0 %v54
    %v154 = vpop.f32.mrb[0].mxu0
    %v155 = vadd.f32 %v71, %v154
    %v156 = vpop.f32.mrb[0].mxu0
    %v157 = vpop.f32.mrb[0].mxu0
    %v158 = vadd.f32 %v71, %v157
    %v159 = vpop.f32.mrb[0].mxu0
    %160 = vdwg.mxu0
    %v161 = vpack.c.bf16 %v158, %v155
    %v163 = vunpack.c.l.b16 %v161
    %v164 = vunpack.c.h.b16 %v161
    %v165 = vpack.c.b16 %v163, %v163
    %v166 = vpack.c.b16 %v164, %v164
    %169 = vst [vmem:[#allocation6] sm:$0xf] %v165
    %170 = vst [vmem:[#allocation6 + $0x4] sm:$0xf] %v166
    %171 = vmax.xlane.f32.xlu0 %v155
    %v172 = vpop.xlane.xlu0 %171
    %173 = vmax.xlane.f32.xlu0 %v158
    %v174 = vpop.xlane.xlu0 %173
    %v175 = vsub.f32 %v155, %v172
    %v176 = vsub.f32 %v158, %v174
    %v177 = vmul.f32 %v175, 1.442695
    %v178 = vpow.pop %v177
    %v179 = vmul.f32 %v176, 1.442695
    %v180 = vpow.pop %v179
    %181 = vadd.xlane.f32.xlu0 %v178
    %v182 = vpop.xlane.xlu0 %181
    %183 = vadd.xlane.f32.xlu0 %v180
    %v184 = vpop.xlane.xlu0 %183
    %v185 = vlog2.pop %v182
    %v186 = vmul.f32 %v185, 0.6931472
    %v187 = vlog2.pop %v184
    %v188 = vmul.f32 %v187, 0.6931472
    %v189 = vadd.f32 %v172, %v186
    %v190 = vadd.f32 %v174, %v188
    %191 = vset.pattern.permute.xlu0 0
    %192 = vperm.xlu0 %191, %v38
    %v193 = vpop.permute.xlu0 %192
    %194 = vset.pattern.permute.xlu0 0
    %195 = vperm.xlu0 %194, %v39
    %v196 = vpop.permute.xlu0 %195
    %vm197 = vcmp.eq.s32.totalorder %v41, %v193
    %vm198 = vcmp.eq.s32.totalorder %v41, %v196
    %v199 = vsel %vm197, %v155, 0.0
    %v200 = vsel %vm198, %v158, 0.0
    %201 = vadd.xlane.f32.xlu0 %v199
    %v202 = vpop.xlane.xlu0 %201
    %203 = vadd.xlane.f32.xlu0 %v200
    %v204 = vpop.xlane.xlu0 %203
    %v205 = vsub.f32 %v189, %v202
    %v206 = vsub.f32 %v190, %v204
    %s207 = smul.u32 0, 16
    %v208 = vlaneseq
    %v209 = vshrl.u32 %v208, 7
    %v210 = vadd.s32 %v209, 8
    %v211 = vstv %s207
    %v212 = vadd.s32 %v211, %v209
    %v213 = vadd.s32 %v211, %v210
    %vm214 = vcmp.lt.s32.totalorder %v212, 16
    %vm215 = vcmp.lt.s32.totalorder %v213, 16
    %v216 = vsel %vm214, %v205, 0.0
    %v217 = vsel %vm215, %v206, 0.0
    %vm218 = vcmask 7168
    %v219 = vsel %vm218, %v216, 0.0
    %v220 = vsel %vm218, %v217, 0.0
    %v221 = vadd.f32 %v219, %v220
    %222 = vadd.xlane.f32.xlu0 %v221
    %v223 = vpop.xlane.xlu0 %222
    %v224 = vrot.slane %v223, 4
    %v225 = vadd.f32 %v223, %v224
    %v226 = vrot.slane %v225, 2
    %v227 = vadd.f32 %v225, %v226
    %v228 = vrot.slane %v227, 1
    %v229 = vadd.f32 %v227, %v228
    %s230 = vtos %v229
    %s231 = scalar_lea.smem [#allocation7], 0
    %232 = sst [smem:[%s231]] %s230
    // Predicated region
    $region22: #{tpu_custom_call.1} parent=1 // pred_check
      _
    $region23: #{tpu_custom_call.1} parent=1 // pred_check_branch
      %234 = sbr.rel (0) target = $region25
    $region24: #{tpu_custom_call.1} parent=1 // pred_region
      %s236 = ssub.s32 128, 128
      %237 = vsyncadd [#allocation4], %s236
      %s238 = sshll.u32 [#allocation6], 4
      %s239 = int_to_ptr.vmem [resolvable:$true] %s238
      %244 = dma.vmem_to_hbm [thread:$0]  %s239, 128, %s4, [#allocation4], 64, 64, 4
    $region25: #{tpu_custom_call.1} parent=1 // pred_fallthru
      _
    // Predicated region
    $region26: #{tpu_custom_call.1} parent=1 // pred_check
      _
    $region27: #{tpu_custom_call.1} parent=1 // pred_check_branch
      %246 = sbr.rel (0) target = $region29
    $region28: #{tpu_custom_call.1} parent=1 // pred_region
      %s248 = ssub.s32 16, 16
      %249 = vsyncadd [#allocation5], %s248
      %252 = dma.smem_to_hbm [#allocation7], 16, %s5, [#allocation5]
    $region29: #{tpu_custom_call.1} parent=1 // pred_fallthru
      _
    // Predicated region
    $region30: #{tpu_custom_call.1} parent=1 // pred_check
      _
    $region31: #{tpu_custom_call.1} parent=1 // pred_check_branch
      %254 = sbr.rel (0) target = $region33
    $region32: #{tpu_custom_call.1} parent=1 // pred_region
      %255 = dma.done [#allocation4], 128
    $region33: #{tpu_custom_call.1} parent=1 // pred_fallthru
      _
    // Predicated region
    $region34: #{tpu_custom_call.1} parent=1 // pred_check
      _
    $region35: #{tpu_custom_call.1} parent=1 // pred_check_branch
      %257 = sbr.rel (0) target = $region37
    $region36: #{tpu_custom_call.1} parent=1 // pred_region
      %258 = dma.done [#allocation5], 16
    $region37: #{tpu_custom_call.1} parent=1 // pred_fallthru
      _
    %259 = sfence
    %260 = vsyncpa [#allocation3], 1
    %261 = vsyncpa [#allocation4], 1
    %262 = vsyncpa [#allocation5], 1

</llo_original>
